<compile_context>
chip_gen: v5e
topology: v5e:2x2
jax: 0.10.0
libtpu: 0.0.40
codegen_flags: <defaults>
</compile_context>

<pallas_src>
import jax
import jax.numpy as jnp
from jax import lax
from jax.experimental import pallas as pl
from jax.experimental.pallas import tpu as pltpu


def _round_up(x, m):
    return ((x + m - 1) // m) * m


def _make_mlp_kernel(n_hidden, compute_dtype, activation):
    """Fused MLP: n_hidden (Linear+act) blocks + final Linear(nodes, 1) as a reduce."""
    if activation == "relu":
        act = lambda h: jnp.maximum(h, 0.0)
    elif activation == "leaky_relu":
        act = lambda h: jnp.where(h >= 0.0, h, 0.01 * h)
    elif activation == "tanh":
        act = jnp.tanh
    else:
        raise ValueError(f"unsupported activation: {activation}")

    def kernel(*refs):
        x_ref = refs[0]       # (TM, input_dim) -- batch-major block straight from HBM
        o_ref = refs[-1]      # (1, TM)         -- lane-dense output row
        p = refs[1:-1]        # W0, b0, ..., W_{n-1}, b_{n-1}, w_out_col, b_out

        # Layer 0: contract input_dim of W0 (nodes, in) against input_dim of the
        # (TM, in) x block -> feature-major (nodes, TM); batch stays on lanes.
        x = x_ref[...].astype(compute_dtype)
        h = lax.dot_general(p[0][...], x,
                            dimension_numbers=(((1,), (1,)), ((), ())),
                            preferred_element_type=jnp.float32)
        h = act(h + p[1][...])               # bias + activation in f32
        # nn.Dropout(d): identity in eval mode.

        for i in range(1, n_hidden):
            w = p[2 * i][...]                # (nodes, nodes), compute_dtype
            b = p[2 * i + 1][...]            # (nodes, 1), f32
            h = jnp.dot(w, h.astype(compute_dtype),
                        preferred_element_type=jnp.float32)
            h = act(h + b)

        w_out = p[-2][...]                   # (nodes, 1), f32
        b_out = p[-1][...]                   # (1, 1), f32
        # Final Linear(nodes, 1): VPU multiply + sublane reduce (no N=1 MXU push),
        # stored as a lane-dense (1, TM) row.
        o_ref[...] = (jnp.sum(h * w_out, axis=0, keepdims=True) + b_out
                      ).astype(o_ref.dtype)

    return kernel


def neural_net_kk_forward(x, params, *, block_batch=8192,
                          compute_dtype=jnp.bfloat16, activation="relu"):
    """Forward pass of NeuralNetKK (const_arch=True, eval-mode dropout, no batchnorm).

    x:      (B, input_dim) float array, batch-major.
    params: list of (W, b) in PyTorch layout: W (out_features, in_features),
            b (out_features,) or (out_features, 1). Last entry is Linear(nodes, 1).
    compute_dtype: dtype of the MXU operands only (bf16 default for v6e/v7x);
            accumulation, bias and activation stay f32.  Use jnp.float32 for
            exact PyTorch-f32 parity.
    Returns (B, 1) float32.
    """
    B, input_dim = x.shape
    n_hidden = len(params) - 1
    assert n_hidden >= 1

    # ---- Batch tiling: big lane tiles, >=2 grid steps when possible, no HBM pad.
    b_ceil = _round_up(B, 128)
    tm_cap = _round_up(min(block_batch, b_ceil), 128)
    n_steps = max(pl.cdiv(b_ceil, tm_cap), 2 if b_ceil >= 256 else 1)
    tm = _round_up(pl.cdiv(b_ceil, n_steps), 128)
    grid = (pl.cdiv(b_ceil, tm),)

    x = x.astype(jnp.float32)

    # ---- Parameters: whole-array blocks, constant index -> VMEM resident.
    flat_params = []
    for idx, (w, b) in enumerate(params):
        w = jnp.asarray(w, jnp.float32)
        b = jnp.asarray(b, jnp.float32).reshape(w.shape[0], 1)
        if idx == n_hidden:
            # Head weight (1, nodes) -> column (nodes, 1) for the f32 VPU reduce.
            w = w.reshape(-1, 1)
        else:
            # Pre-cast hidden weights once in the wrapper (halves weight DMA and
            # removes the per-step VPU cast when compute_dtype is bf16).
            w = w.astype(compute_dtype)
        flat_params.append(w)
        flat_params.append(b)

    x_spec = pl.BlockSpec((tm, input_dim), lambda i: (i, 0))
    param_specs = [pl.BlockSpec(p.shape, lambda i: (0, 0)) for p in flat_params]
    out_spec = pl.BlockSpec((1, tm), lambda i: (0, i))

    # ---- Cost / VMEM hints.
    flops = sum(2 * B * w.shape[0] * w.shape[1] for w, _ in params)
    transcendentals = (B * sum(w.shape[0] for w, _ in params[:-1])
                       if activation == "tanh" else 0)
    param_bytes = sum(int(p.size) * p.dtype.itemsize for p in flat_params)
    bytes_accessed = int(x.size) * 4 + param_bytes + b_ceil * 4

    csize = jnp.dtype(compute_dtype).itemsize
    max_feat = max(w.shape[0] for w, _ in params)
    vmem_est = (2 * tm * input_dim * 4       # double-buffered x block (f32)
                + 2 * tm * 4                 # double-buffered out block
                + tm * input_dim * csize     # cast / transposed layer-0 operand
                + 4 * tm * max_feat * 4      # live feature-major activations (f32)
                + param_bytes)
    vmem_limit = int(min(64 * 1024 * 1024, max(32 * 1024 * 1024, 2 * vmem_est)))

    out = pl.pallas_call(
        _make_mlp_kernel(n_hidden, compute_dtype, activation),
        out_shape=jax.ShapeDtypeStruct((1, b_ceil), jnp.float32),
        grid=grid,
        in_specs=[x_spec] + param_specs,
        out_specs=out_spec,
        compiler_params=pltpu.CompilerParams(
            dimension_semantics=("parallel",),
            vmem_limit_bytes=vmem_limit),
        cost_estimate=pl.CostEstimate(flops=flops,
                                      transcendentals=transcendentals,
                                      bytes_accessed=bytes_accessed),
    )(x, *flat_params)

    return out[0, :B].reshape(B, 1)


def init_params(key, input_dim, nodes, hidden_layers):
    """PyTorch-style init: W (out, in), b (out, 1), U(-1/sqrt(fan_in), +1/sqrt(fan_in))."""
    dims = [input_dim] + [nodes] * hidden_layers + [1]
    params = []
    for i in range(len(dims) - 1):
        key, kw, kb = jax.random.split(key, 3)
        bound = 1.0 / float(dims[i]) ** 0.5
        w = jax.random.uniform(kw, (dims[i + 1], dims[i]), jnp.float32, -bound, bound)
        b = jax.random.uniform(kb, (dims[i + 1], 1), jnp.float32, -bound, bound)
        params.append((w, b))
    return params


def reference_forward(x, params):
    h = x
    n_hidden = len(params) - 1
    for i, (w, b) in enumerate(params):
        h = h @ w.T + b.reshape(1, -1)
        if i < n_hidden:
            h = jnp.maximum(h, 0.0)
    return h


if __name__ == "__main__":
    # Shapes consistent with the module: input_dim=16, nodes=32, 3 hidden layers.
    input_dim, nodes, hidden_layers = 16, 32, 3

    key = jax.random.PRNGKey(0)
    kp, kx1, kx2, kx3 = jax.random.split(key, 4)
    params = init_params(kp, input_dim, nodes, hidden_layers)

    # Small batch (single tile), ragged multi-tile batch, and a 2-step batch.
    for kx, batch in ((kx1, 8), (kx2, 300), (kx3, 1000)):
        x = jax.random.normal(kx, (batch, input_dim), dtype=jnp.float32)
        ref = reference_forward(x, params)

        # Exact-parity f32 path.
        out_f32 = jax.block_until_ready(
            neural_net_kk_forward(x, params, compute_dtype=jnp.float32))
        assert out_f32.shape == (batch, 1)
        assert jnp.allclose(out_f32, ref, atol=1e-5, rtol=1e-5), "f32 mismatch vs reference"

        # Default bf16-MXU path (f32 accumulation) -- relaxed tolerance.
        out_bf16 = jax.block_until_ready(neural_net_kk_forward(x, params))
        assert out_bf16.shape == (batch, 1)
        assert jnp.allclose(out_bf16, ref, atol=5e-2, rtol=5e-2), "bf16 mismatch vs reference"

    print("KERNEL_OK")
</pallas_src>

<mosaic_0001>
module attributes {stable_mosaic.version = 11 : i64} {
  func.func @kernel(%arg0: i32, %arg1: memref<128x16xf32, #tpu.memory_space<vmem>>, %arg2: memref<32x16xf32, #tpu.memory_space<vmem>>, %arg3: memref<32x1xf32, #tpu.memory_space<vmem>>, %arg4: memref<32x32xf32, #tpu.memory_space<vmem>>, %arg5: memref<32x1xf32, #tpu.memory_space<vmem>>, %arg6: memref<32x32xf32, #tpu.memory_space<vmem>>, %arg7: memref<32x1xf32, #tpu.memory_space<vmem>>, %arg8: memref<32x1xf32, #tpu.memory_space<vmem>>, %arg9: memref<1x1xf32, #tpu.memory_space<vmem>>, %arg10: memref<1x128xf32, #tpu.memory_space<vmem>>) attributes {dimension_semantics = [#tpu.dimension_semantics<parallel>], iteration_bounds = array<i64: 1>, scalar_prefetch = 0 : i64, scratch_operands = 0 : i64, tpu.core_type = #tpu.core_type<tc>, window_params = [{transform_indices = @transform_0, window_bounds = array<i64: 128, 16>}, {pipeline_mode = #tpu.pipeline_mode<synchronous>, transform_indices = @transform_1, window_bounds = array<i64: 32, 16>}, {pipeline_mode = #tpu.pipeline_mode<synchronous>, transform_indices = @transform_2, window_bounds = array<i64: 32, 1>}, {pipeline_mode = #tpu.pipeline_mode<synchronous>, transform_indices = @transform_3, window_bounds = array<i64: 32, 32>}, {pipeline_mode = #tpu.pipeline_mode<synchronous>, transform_indices = @transform_4, window_bounds = array<i64: 32, 1>}, {pipeline_mode = #tpu.pipeline_mode<synchronous>, transform_indices = @transform_5, window_bounds = array<i64: 32, 32>}, {pipeline_mode = #tpu.pipeline_mode<synchronous>, transform_indices = @transform_6, window_bounds = array<i64: 32, 1>}, {pipeline_mode = #tpu.pipeline_mode<synchronous>, transform_indices = @transform_7, window_bounds = array<i64: 32, 1>}, {pipeline_mode = #tpu.pipeline_mode<synchronous>, transform_indices = @transform_8, window_bounds = array<i64: 1, 1>}, {transform_indices = @transform_9, window_bounds = array<i64: 1, 128>}]} {
    %c0 = arith.constant 0 : index
    %c0_0 = arith.constant 0 : index
    %0 = vector.load %arg1[%c0, %c0_0] : memref<128x16xf32, #tpu.memory_space<vmem>>, vector<128x16xf32>
    %c0_1 = arith.constant 0 : index
    %c0_2 = arith.constant 0 : index
    %1 = vector.load %arg2[%c0_1, %c0_2] : memref<32x16xf32, #tpu.memory_space<vmem>>, vector<32x16xf32>
    %cst = arith.constant dense<0.000000e+00> : vector<32x128xf32>
    %2 = tpu.matmul %1, %0, %cst {dimension_numbers = #tpu.dot_dimension_numbers<[1], [1], [0], [0], [0, 0, 1, 0], [], []>} : vector<32x16xf32>, vector<128x16xf32>, vector<32x128xf32> -> vector<32x128xf32>
    %c0_3 = arith.constant 0 : index
    %c0_4 = arith.constant 0 : index
    %3 = vector.load %arg3[%c0_3, %c0_4] : memref<32x1xf32, #tpu.memory_space<vmem>>, vector<32x1xf32>
    %4 = vector.broadcast %3 : vector<32x1xf32> to vector<32x128xf32>
    %5 = arith.addf %2, %4 : vector<32x128xf32>
    %cst_5 = arith.constant 0.000000e+00 : f32
    %6 = vector.broadcast %cst_5 : f32 to vector<32x128xf32>
    %7 = arith.maximumf %5, %6 : vector<32x128xf32>
    %c0_6 = arith.constant 0 : index
    %c0_7 = arith.constant 0 : index
    %8 = vector.load %arg4[%c0_6, %c0_7] : memref<32x32xf32, #tpu.memory_space<vmem>>, vector<32x32xf32>
    %c0_8 = arith.constant 0 : index
    %c0_9 = arith.constant 0 : index
    %9 = vector.load %arg5[%c0_8, %c0_9] : memref<32x1xf32, #tpu.memory_space<vmem>>, vector<32x1xf32>
    %cst_10 = arith.constant dense<0.000000e+00> : vector<32x128xf32>
    %10 = tpu.matmul %8, %7, %cst_10 {dimension_numbers = #tpu.dot_dimension_numbers<[1], [0], [0], [1], [0, 0, 1, 1], [], []>} : vector<32x32xf32>, vector<32x128xf32>, vector<32x128xf32> -> vector<32x128xf32>
    %11 = vector.broadcast %9 : vector<32x1xf32> to vector<32x128xf32>
    %12 = arith.addf %10, %11 : vector<32x128xf32>
    %cst_11 = arith.constant 0.000000e+00 : f32
    %13 = vector.broadcast %cst_11 : f32 to vector<32x128xf32>
    %14 = arith.maximumf %12, %13 : vector<32x128xf32>
    %c0_12 = arith.constant 0 : index
    %c0_13 = arith.constant 0 : index
    %15 = vector.load %arg6[%c0_12, %c0_13] : memref<32x32xf32, #tpu.memory_space<vmem>>, vector<32x32xf32>
    %c0_14 = arith.constant 0 : index
    %c0_15 = arith.constant 0 : index
    %16 = vector.load %arg7[%c0_14, %c0_15] : memref<32x1xf32, #tpu.memory_space<vmem>>, vector<32x1xf32>
    %cst_16 = arith.constant dense<0.000000e+00> : vector<32x128xf32>
    %17 = tpu.matmul %15, %14, %cst_16 {dimension_numbers = #tpu.dot_dimension_numbers<[1], [0], [0], [1], [0, 0, 1, 1], [], []>} : vector<32x32xf32>, vector<32x128xf32>, vector<32x128xf32> -> vector<32x128xf32>
    %18 = vector.broadcast %16 : vector<32x1xf32> to vector<32x128xf32>
    %19 = arith.addf %17, %18 : vector<32x128xf32>
    %cst_17 = arith.constant 0.000000e+00 : f32
    %20 = vector.broadcast %cst_17 : f32 to vector<32x128xf32>
    %21 = arith.maximumf %19, %20 : vector<32x128xf32>
    %c0_18 = arith.constant 0 : index
    %c0_19 = arith.constant 0 : index
    %22 = vector.load %arg8[%c0_18, %c0_19] : memref<32x1xf32, #tpu.memory_space<vmem>>, vector<32x1xf32>
    %c0_20 = arith.constant 0 : index
    %c0_21 = arith.constant 0 : index
    %23 = vector.load %arg9[%c0_20, %c0_21] : memref<1x1xf32, #tpu.memory_space<vmem>>, vector<1x1xf32>
    %24 = vector.broadcast %22 : vector<32x1xf32> to vector<32x128xf32>
    %25 = arith.mulf %21, %24 : vector<32x128xf32>
    %cst_22 = arith.constant dense<0.000000e+00> : vector<128xf32>
    %26 = vector.multi_reduction <add>, %25, %cst_22 [0] : vector<32x128xf32> to vector<128xf32>
    %27 = vector.shape_cast %26 : vector<128xf32> to vector<1x128xf32>
    %28 = vector.broadcast %23 : vector<1x1xf32> to vector<1x128xf32>
    %29 = arith.addf %27, %28 : vector<1x128xf32>
    %c0_23 = arith.constant 0 : index
    %c0_24 = arith.constant 0 : index
    %30 = vector.load %arg10[%c0_23, %c0_24] : memref<1x128xf32, #tpu.memory_space<vmem>>, vector<1x128xf32>
    tpu.vector_store %arg10[%c0_23, %c0_24], %29 {strides = array<i32>} : memref<1x128xf32, #tpu.memory_space<vmem>>, vector<1x128xf32>,
    return
  }
  func.func @transform_0(%arg0: i32) -> (i32, i32) {
    %c0_i32 = arith.constant 0 : i32
    %c0_i32_0 = arith.constant 0 : i32
    return %arg0, %c0_i32 : i32, i32
  }
  func.func @transform_1(%arg0: i32) -> (i32, i32) {
    %c0_i32 = arith.constant 0 : i32
    %c0_i32_0 = arith.constant 0 : i32
    %c0_i32_1 = arith.constant 0 : i32
    return %c0_i32, %c0_i32_0 : i32, i32
  }
  func.func @transform_2(%arg0: i32) -> (i32, i32) {
    %c0_i32 = arith.constant 0 : i32
    %c0_i32_0 = arith.constant 0 : i32
    %c0_i32_1 = arith.constant 0 : i32
    return %c0_i32, %c0_i32_0 : i32, i32
  }
  func.func @transform_3(%arg0: i32) -> (i32, i32) {
    %c0_i32 = arith.constant 0 : i32
    %c0_i32_0 = arith.constant 0 : i32
    %c0_i32_1 = arith.constant 0 : i32
    return %c0_i32, %c0_i32_0 : i32, i32
  }
  func.func @transform_4(%arg0: i32) -> (i32, i32) {
    %c0_i32 = arith.constant 0 : i32
    %c0_i32_0 = arith.constant 0 : i32
    %c0_i32_1 = arith.constant 0 : i32
    return %c0_i32, %c0_i32_0 : i32, i32
  }
  func.func @transform_5(%arg0: i32) -> (i32, i32) {
    %c0_i32 = arith.constant 0 : i32
    %c0_i32_0 = arith.constant 0 : i32
    %c0_i32_1 = arith.constant 0 : i32
    return %c0_i32, %c0_i32_0 : i32, i32
  }
  func.func @transform_6(%arg0: i32) -> (i32, i32) {
    %c0_i32 = arith.constant 0 : i32
    %c0_i32_0 = arith.constant 0 : i32
    %c0_i32_1 = arith.constant 0 : i32
    return %c0_i32, %c0_i32_0 : i32, i32
  }
  func.func @transform_7(%arg0: i32) -> (i32, i32) {
    %c0_i32 = arith.constant 0 : i32
    %c0_i32_0 = arith.constant 0 : i32
    %c0_i32_1 = arith.constant 0 : i32
    return %c0_i32, %c0_i32_0 : i32, i32
  }
  func.func @transform_8(%arg0: i32) -> (i32, i32) {
    %c0_i32 = arith.constant 0 : i32
    %c0_i32_0 = arith.constant 0 : i32
    %c0_i32_1 = arith.constant 0 : i32
    return %c0_i32, %c0_i32_0 : i32, i32
  }
  func.func @transform_9(%arg0: i32) -> (i32, i32) {
    %c0_i32 = arith.constant 0 : i32
    %c0_i32_0 = arith.constant 0 : i32
    return %c0_i32, %arg0 : i32, i32
  }
}

</mosaic_0001>

<llo_original>
// kernel: tpu_custom_call.1
$region0: #{tpu_custom_call.1}
  #allocation0 [shape = 'u32[]', space=smem, size = 0x4, offset = 0x4, fixed_abs, tag = 'smem constant byte address 0x4 - core index']
  #allocation1 [shape = 'u32[72,128]{1,0:T(1,128)}', space=vmem, size = 0x9000, scoped, tag = 'internal scratch']
  #allocation2 [shape = 'f32[1,1]{1,0:T(1,128)S(1)}', space=vmem, size = 0x200, scoped, tag = 'scoped memory for tpu_custom_call.1']
  %s0 = inlined_call_operand.vmem [shape: f32[8,16], index: 0, kind: input, shape index: {}]
  %s1 = inlined_call_operand.vmem [shape: f32[32,16], index: 1, kind: input, shape index: {}]
  %s2 = inlined_call_operand.vmem [shape: f32[32,1], index: 2, kind: input, shape index: {}]
  %s3 = inlined_call_operand.vmem [shape: f32[32,32], index: 3, kind: input, shape index: {}]
  %s4 = inlined_call_operand.vmem [shape: f32[32,1], index: 4, kind: input, shape index: {}]
  %s5 = inlined_call_operand.vmem [shape: f32[32,32], index: 5, kind: input, shape index: {}]
  %s6 = inlined_call_operand.vmem [shape: f32[32,1], index: 6, kind: input, shape index: {}]
  %s7 = inlined_call_operand.vmem [shape: f32[32,1], index: 7, kind: input, shape index: {}]
  %s8 = inlined_call_operand.<no memory space> [shape: f32[1,1], index: 8, kind: input, shape index: {}]
  %s9 = inlined_call_operand.hbm [shape: f32[1,128], index: 9, kind: output, shape index: {}]
  %s10 = sld [smem:[#allocation0]]
  $region46: #{tpu_custom_call.1} parent=0
    _
  %s12 = ssub.s32 1, %s10
  %s13 = scalar_select 0, %s12, %s10
  %v14 = vstv %s8
  %15 = vst [vmem:[#allocation2] sm:$0x1] %v14
  $region1: #{tpu_custom_call.1} parent=0
    #allocation3 [shape = 'u8[512]{0}', space=vmem, size = 0x400, scoped, tag = 'output window, operand 0, single buffered']
    #allocation4 [shape = 's32[1]{0}', space=sflag, size = 0x4, scoped, tag = 'scoped memory for tpu_custom_call.1']
    %16 = vsyncpa [#allocation4], 0
    // Predicated region
    $region2: #{tpu_custom_call.1} parent=1 // pred_check
      _
    $region3: #{tpu_custom_call.1} parent=1 // pred_check_branch
      %18 = sbr.rel (0) target = $region5
    $region4: #{tpu_custom_call.1} parent=1 // pred_region
      _
    $region5: #{tpu_custom_call.1} parent=1 // pred_fallthru
      _
    // Predicated region
    $region6: #{tpu_custom_call.1} parent=1 // pred_check
      _
    $region7: #{tpu_custom_call.1} parent=1 // pred_check_branch
      %20 = sbr.rel (0) target = $region9
    $region8: #{tpu_custom_call.1} parent=1 // pred_region
      _
    $region9: #{tpu_custom_call.1} parent=1 // pred_fallthru
      _
    // Predicated region
    $region10: #{tpu_custom_call.1} parent=1 // pred_check
      _
    $region11: #{tpu_custom_call.1} parent=1 // pred_check_branch
      %22 = sbr.rel (0) target = $region13
    $region12: #{tpu_custom_call.1} parent=1 // pred_region
      _
    $region13: #{tpu_custom_call.1} parent=1 // pred_fallthru
      _
    // Predicated region
    $region14: #{tpu_custom_call.1} parent=1 // pred_check
      _
    $region15: #{tpu_custom_call.1} parent=1 // pred_check_branch
      %24 = sbr.rel (0) target = $region17
    $region16: #{tpu_custom_call.1} parent=1 // pred_region
      _
    $region17: #{tpu_custom_call.1} parent=1 // pred_fallthru
      _
    // Predicated region
    $region18: #{tpu_custom_call.1} parent=1 // pred_check
      _
    $region19: #{tpu_custom_call.1} parent=1 // pred_check_branch
      %26 = sbr.rel (0) target = $region21
    $region20: #{tpu_custom_call.1} parent=1 // pred_region
      _
    $region21: #{tpu_custom_call.1} parent=1 // pred_fallthru
      _
    // Predicated region
    $region22: #{tpu_custom_call.1} parent=1 // pred_check
      _
    $region23: #{tpu_custom_call.1} parent=1 // pred_check_branch
      %28 = sbr.rel (0) target = $region25
    $region24: #{tpu_custom_call.1} parent=1 // pred_region
      _
    $region25: #{tpu_custom_call.1} parent=1 // pred_fallthru
      _
    // Predicated region
    $region26: #{tpu_custom_call.1} parent=1 // pred_check
      _
    $region27: #{tpu_custom_call.1} parent=1 // pred_check_branch
      %30 = sbr.rel (0) target = $region29
    $region28: #{tpu_custom_call.1} parent=1 // pred_region
      _
    $region29: #{tpu_custom_call.1} parent=1 // pred_fallthru
      _
    // Predicated region
    $region30: #{tpu_custom_call.1} parent=1 // pred_check
      _
    $region31: #{tpu_custom_call.1} parent=1 // pred_check_branch
      %32 = sbr.rel (0) target = $region33
    $region32: #{tpu_custom_call.1} parent=1 // pred_region
      _
    $region33: #{tpu_custom_call.1} parent=1 // pred_fallthru
      _
    // Predicated region
    $region34: #{tpu_custom_call.1} parent=1 // pred_check
      _
    $region35: #{tpu_custom_call.1} parent=1 // pred_check_branch
      %34 = sbr.rel (0) target = $region37
    $region36: #{tpu_custom_call.1} parent=1 // pred_region
      _
    $region37: #{tpu_custom_call.1} parent=1 // pred_fallthru
      _
    %v35 = vld [vmem:[%s0] sm:$0xff]
    %v36 = vld [vmem:[%s0 + $0x8] sm:$0xff]
    %v37 = vld [vmem:[%s0 + $0x10] sm:$0xff]
    %v38 = vld [vmem:[%s0 + $0x18] sm:$0xff]
    %v39 = vld [vmem:[%s0 + $0x20] sm:$0xff]
    %v40 = vld [vmem:[%s0 + $0x28] sm:$0xff]
    %v41 = vld [vmem:[%s0 + $0x30] sm:$0xff]
    %v42 = vld [vmem:[%s0 + $0x38] sm:$0xff]
    %v43 = vld [vmem:[%s0 + $0x40] sm:$0xff]
    %v44 = vld [vmem:[%s0 + $0x48] sm:$0xff]
    %v45 = vld [vmem:[%s0 + $0x50] sm:$0xff]
    %v46 = vld [vmem:[%s0 + $0x58] sm:$0xff]
    %v47 = vld [vmem:[%s0 + $0x60] sm:$0xff]
    %v48 = vld [vmem:[%s0 + $0x68] sm:$0xff]
    %v49 = vld [vmem:[%s0 + $0x70] sm:$0xff]
    %v50 = vld [vmem:[%s0 + $0x78] sm:$0xff]
    %v51 = vld [vmem:[%s1] sm:$0xff]
    %v52 = vld [vmem:[%s1 + $0x8] sm:$0xff]
    %v53 = vld [vmem:[%s1 + $0x10] sm:$0xff]
    %v54 = vld [vmem:[%s1 + $0x18] sm:$0xff]
    %v55 = vld [vmem:[%s2] sm:$0xff]
    %v56 = vld [vmem:[%s2 + $0x8] sm:$0xff]
    %v57 = vld [vmem:[%s2 + $0x10] sm:$0xff]
    %v58 = vld [vmem:[%s2 + $0x18] sm:$0xff]
    %60 = vset.pattern.permute.xlu0 0
    %61 = vperm.xlu0 %60, %v55
    %v62 = vpop.permute.xlu0 %61
    %65 = vset.pattern.permute.xlu0 0
    %66 = vperm.xlu0 %65, %v56
    %v67 = vpop.permute.xlu0 %66
    %70 = vset.pattern.permute.xlu0 0
    %71 = vperm.xlu0 %70, %v57
    %v72 = vpop.permute.xlu0 %71
    %75 = vset.pattern.permute.xlu0 0
    %76 = vperm.xlu0 %75, %v58
    %v77 = vpop.permute.xlu0 %76
    %vm79 = vcmask 130048
    %v81 = vsel %vm79, %v51, 0
    %v84 = vsel %vm79, %v52, 0
    %v87 = vsel %vm79, %v53, 0
    %v90 = vsel %vm79, %v54, 0
    %v93 = vsel %vm79, %v35, 0
    %v96 = vsel %vm79, %v36, 0
    %v99 = vsel %vm79, %v37, 0
    %v102 = vsel %vm79, %v38, 0
    %v105 = vsel %vm79, %v39, 0
    %v108 = vsel %vm79, %v40, 0
    %v111 = vsel %vm79, %v41, 0
    %v114 = vsel %vm79, %v42, 0
    %v117 = vsel %vm79, %v43, 0
    %v120 = vsel %vm79, %v44, 0
    %v123 = vsel %vm79, %v45, 0
    %v126 = vsel %vm79, %v46, 0
    %v129 = vsel %vm79, %v47, 0
    %v132 = vsel %vm79, %v48, 0
    %v135 = vsel %vm79, %v49, 0
    %v138 = vsel %vm79, %v50, 0
    %140 = vmatpush.xpose.msra.mxu0 %v138
    %141 = vmatpush.xpose.msra.mxu0 %v135
    %142 = vmatpush.xpose.msra.mxu0 %v132
    %143 = vmatpush.xpose.msra.mxu0 %v129
    %144 = vmatpush.xpose.msra.mxu0 %v126
    %145 = vmatpush.xpose.msra.mxu0 %v123
    %146 = vmatpush.xpose.msra.mxu0 %v120
    %147 = vmatpush.xpose.msra.mxu0 %v117
    %148 = vmatpush.xpose.msra.mxu0 %v114
    %149 = vmatpush.xpose.msra.mxu0 %v111
    %150 = vmatpush.xpose.msra.mxu0 %v108
    %151 = vmatpush.xpose.msra.mxu0 %v105
    %152 = vmatpush.xpose.msra.mxu0 %v102
    %153 = vmatpush.xpose.msra.mxu0 %v99
    %154 = vmatpush.xpose.msra.mxu0 %v96
    %155 = vmatpush.xpose.msra.mxu0 %v93
    %156 = vmatmul.f32.gmra.mxu0 %v81
    %v157 = vpop.f32.mrf.mxu0
    %v158 = vadd.f32 %v62, %v157
    %159 = vmatmul.f32.gmra.mxu0 %v84
    %v160 = vpop.f32.mrf.mxu0
    %v161 = vadd.f32 %v67, %v160
    %162 = vmatmul.f32.gmra.mxu0 %v87
    %v163 = vpop.f32.mrf.mxu0
    %v164 = vadd.f32 %v72, %v163
    %165 = vmatmul.f32.gmra.mxu0 %v90
    %v166 = vpop.f32.mrf.mxu0
    %v167 = vadd.f32 %v77, %v166
    %168 = vdwg.mxu0
    %v169 = vmax.f32 %v158, 0.0
    %v170 = vmax.f32 %v161, 0.0
    %v171 = vmax.f32 %v164, 0.0
    %v172 = vmax.f32 %v167, 0.0
    %v173 = vld [vmem:[%s3] sm:$0xff]
    %v174 = vld [vmem:[%s3 + $0x8] sm:$0xff]
    %v175 = vld [vmem:[%s3 + $0x10] sm:$0xff]
    %v176 = vld [vmem:[%s3 + $0x18] sm:$0xff]
    %v177 = vld [vmem:[%s4] sm:$0xff]
    %v178 = vld [vmem:[%s4 + $0x8] sm:$0xff]
    %v179 = vld [vmem:[%s4 + $0x10] sm:$0xff]
    %v180 = vld [vmem:[%s4 + $0x18] sm:$0xff]
    %182 = vset.pattern.permute.xlu0 0
    %183 = vperm.xlu0 %182, %v177
    %v184 = vpop.permute.xlu0 %183
    %187 = vset.pattern.permute.xlu0 0
    %188 = vperm.xlu0 %187, %v178
    %v189 = vpop.permute.xlu0 %188
    %192 = vset.pattern.permute.xlu0 0
    %193 = vperm.xlu0 %192, %v179
    %v194 = vpop.permute.xlu0 %193
    %197 = vset.pattern.permute.xlu0 0
    %198 = vperm.xlu0 %197, %v180
    %v199 = vpop.permute.xlu0 %198
    %vm201 = vcmask 261120
    %v203 = vsel %vm201, %v173, 0
    %v206 = vsel %vm201, %v174, 0
    %v209 = vsel %vm201, %v175, 0
    %v212 = vsel %vm201, %v176, 0
    %214 = vmatpush.msra.mxu0 0.0
    %215 = vmatpush.msra.mxu0 0.0
    %216 = vmatpush.msra.mxu0 0.0
    %217 = vmatpush.msra.mxu0 0.0
    %218 = vmatpush.msra.mxu0 0.0
    %219 = vmatpush.msra.mxu0 0.0
    %220 = vmatpush.msra.mxu0 0.0
    %221 = vmatpush.msra.mxu0 0.0
    %222 = vmatpush.msra.mxu0 0.0
    %223 = vmatpush.msra.mxu0 0.0
    %224 = vmatpush.msra.mxu0 0.0
    %225 = vmatpush.msra.mxu0 0.0
    %226 = vmatpush.msra.mxu0 %v172
    %227 = vmatpush.msra.mxu0 %v171
    %228 = vmatpush.msra.mxu0 %v170
    %229 = vmatpush.msra.mxu0 %v169
    %230 = vmatmul.f32.gmra.mxu0 %v203
    %v231 = vpop.f32.mrf.mxu0
    %v232 = vadd.f32 %v184, %v231
    %233 = vmatmul.f32.gmra.mxu0 %v206
    %v234 = vpop.f32.mrf.mxu0
    %v235 = vadd.f32 %v189, %v234
    %236 = vmatmul.f32.gmra.mxu0 %v209
    %v237 = vpop.f32.mrf.mxu0
    %v238 = vadd.f32 %v194, %v237
    %239 = vmatmul.f32.gmra.mxu0 %v212
    %v240 = vpop.f32.mrf.mxu0
    %v241 = vadd.f32 %v199, %v240
    %242 = vdwg.mxu0
    %v243 = vmax.f32 %v232, 0.0
    %v244 = vmax.f32 %v235, 0.0
    %v245 = vmax.f32 %v238, 0.0
    %v246 = vmax.f32 %v241, 0.0
    %v247 = vld [vmem:[%s5] sm:$0xff]
    %v248 = vld [vmem:[%s5 + $0x8] sm:$0xff]
    %v249 = vld [vmem:[%s5 + $0x10] sm:$0xff]
    %v250 = vld [vmem:[%s5 + $0x18] sm:$0xff]
    %v251 = vld [vmem:[%s6] sm:$0xff]
    %v252 = vld [vmem:[%s6 + $0x8] sm:$0xff]
    %v253 = vld [vmem:[%s6 + $0x10] sm:$0xff]
    %v254 = vld [vmem:[%s6 + $0x18] sm:$0xff]
    %256 = vset.pattern.permute.xlu0 0
    %257 = vperm.xlu0 %256, %v251
    %v258 = vpop.permute.xlu0 %257
    %261 = vset.pattern.permute.xlu0 0
    %262 = vperm.xlu0 %261, %v252
    %v263 = vpop.permute.xlu0 %262
    %266 = vset.pattern.permute.xlu0 0
    %267 = vperm.xlu0 %266, %v253
    %v268 = vpop.permute.xlu0 %267
    %271 = vset.pattern.permute.xlu0 0
    %272 = vperm.xlu0 %271, %v254
    %v273 = vpop.permute.xlu0 %272
    %v276 = vsel %vm201, %v247, 0
    %v279 = vsel %vm201, %v248, 0
    %v282 = vsel %vm201, %v249, 0
    %v285 = vsel %vm201, %v250, 0
    %287 = vmatpush.msra.mxu0 0.0
    %288 = vmatpush.msra.mxu0 0.0
    %289 = vmatpush.msra.mxu0 0.0
    %290 = vmatpush.msra.mxu0 0.0
    %291 = vmatpush.msra.mxu0 0.0
    %292 = vmatpush.msra.mxu0 0.0
    %293 = vmatpush.msra.mxu0 0.0
    %294 = vmatpush.msra.mxu0 0.0
    %295 = vmatpush.msra.mxu0 0.0
    %296 = vmatpush.msra.mxu0 0.0
    %297 = vmatpush.msra.mxu0 0.0
    %298 = vmatpush.msra.mxu0 0.0
    %299 = vmatpush.msra.mxu0 %v246
    %300 = vmatpush.msra.mxu0 %v245
    %301 = vmatpush.msra.mxu0 %v244
    %302 = vmatpush.msra.mxu0 %v243
    %303 = vmatmul.f32.gmra.mxu0 %v276
    %v304 = vpop.f32.mrf.mxu0
    %v305 = vadd.f32 %v258, %v304
    %306 = vmatmul.f32.gmra.mxu0 %v279
    %v307 = vpop.f32.mrf.mxu0
    %v308 = vadd.f32 %v263, %v307
    %309 = vmatmul.f32.gmra.mxu0 %v282
    %v310 = vpop.f32.mrf.mxu0
    %v311 = vadd.f32 %v268, %v310
    %312 = vmatmul.f32.gmra.mxu0 %v285
    %v313 = vpop.f32.mrf.mxu0
    %v314 = vadd.f32 %v273, %v313
    %315 = vdwg.mxu0
    %v316 = vmax.f32 %v305, 0.0
    %v317 = vmax.f32 %v308, 0.0
    %v318 = vmax.f32 %v311, 0.0
    %v319 = vmax.f32 %v314, 0.0
    %v320 = vld [vmem:[%s7] sm:$0xff]
    %v321 = vld [vmem:[%s7 + $0x8] sm:$0xff]
    %v322 = vld [vmem:[%s7 + $0x10] sm:$0xff]
    %v323 = vld [vmem:[%s7 + $0x18] sm:$0xff]
    %v324 = vld [vmem:[#allocation2] sm:$0x1]
    %326 = vset.pattern.permute.xlu0 0
    %327 = vperm.xlu0 %326, %v320
    %v328 = vpop.permute.xlu0 %327
    %331 = vset.pattern.permute.xlu0 0
    %332 = vperm.xlu0 %331, %v321
    %v333 = vpop.permute.xlu0 %332
    %336 = vset.pattern.permute.xlu0 0
    %337 = vperm.xlu0 %336, %v322
    %v338 = vpop.permute.xlu0 %337
    %341 = vset.pattern.permute.xlu0 0
    %342 = vperm.xlu0 %341, %v323
    %v343 = vpop.permute.xlu0 %342
    %v345 = vmul.f32 %v316, %v328
    %v346 = vmul.f32 %v317, %v333
    %v347 = vmul.f32 %v318, %v338
    %v348 = vmul.f32 %v319, %v343
    %v349 = vadd.f32 %v345, %v346
    %v350 = vadd.f32 %v349, %v347
    %v351 = vadd.f32 %v350, %v348
    %v352 = vrot.slane %v351, 4
    %v353 = vadd.f32 %v351, %v352
    %v354 = vrot.slane %v353, 2
    %v355 = vadd.f32 %v353, %v354
    %v356 = vrot.slane %v355, 1
    %v357 = vadd.f32 %v355, %v356
    %359 = vset.pattern.permute.xlu0 0
    %360 = vperm.xlu0 %359, %v324
    %v361 = vpop.permute.xlu0 %360
    %v363 = vperm.slane %v361, 0
    %v364 = vadd.f32 %v357, %v363
    %365 = vst [vmem:[#allocation3] sm:$0x1] %v364
    // Predicated region
    $region38: #{tpu_custom_call.1} parent=1 // pred_check
      _
    $region39: #{tpu_custom_call.1} parent=1 // pred_check_branch
      %367 = sbr.rel (0) target = $region41
    $region40: #{tpu_custom_call.1} parent=1 // pred_region
      %369 = vsyncadd [#allocation4], 0
      %s371 = sshll.u32 [#allocation3], 4
      %s372 = int_to_ptr.vmem [resolvable:$true] %s371
      %s373 = sshll.u32 %s9, 4
      %s374 = int_to_ptr.hbm [resolvable:$true] %s373
      %376 = dma.vmem_to_hbm [thread:$0]  %s372, 16, %s374, [#allocation4]
    $region41: #{tpu_custom_call.1} parent=1 // pred_fallthru
      _
    // Predicated region
    $region42: #{tpu_custom_call.1} parent=1 // pred_check
      _
    $region43: #{tpu_custom_call.1} parent=1 // pred_check_branch
      %378 = sbr.rel (0) target = $region45
    $region44: #{tpu_custom_call.1} parent=1 // pred_region
      %380 = dma.done [#allocation4], 16
    $region45: #{tpu_custom_call.1} parent=1 // pred_fallthru
      _
    %381 = vsyncpa [#allocation4], 1

</llo_original>
